<compile_context>
chip_gen: v7x
topology: tpu7x:2x2x1
jax: 0.10.0
libtpu: 0.0.40
codegen_flags: <defaults>
</compile_context>

<pallas_src>
import functools

import jax
import jax.numpy as jnp
from jax import lax
from jax.experimental import pallas as pl
from jax.experimental.pallas import tpu as pltpu

EPS = 1e-5
VMEM_LIMIT = 32 * 1024 * 1024  # safe cap on v5e/v6e (128 MiB) and v7x (64 MiB)


def _round_up(n, m):
    return ((n + m - 1) // m) * m


# -----------------------------------------------------------------------------
# Kernel 1: fully fused single-block path (small batch -- the shipped shapes).
# -----------------------------------------------------------------------------
def mlp_small_kernel(x_ref, w0t_ref, vecs_ref, b1_ref, w1t_ref, o_ref, *, inv_b):
    # x_ref:    (B, in_dim)    f32   K unpadded; bf16 cast done in-register
    # w0t_ref:  (in_dim, h_p)  bf16  pre-transposed, hidden-dim padded W0
    # vecs_ref: (3, h_p)       f32   rows = [b0, gamma, beta], zero padded
    # b1_ref:   (1, out_w)     f32
    # w1t_ref:  (h_p, out_w)   bf16  pre-transposed W1 (zero rows for padded K)
    # o_ref:    (B, out_w)
    h = jnp.dot(x_ref[...].astype(jnp.bfloat16), w0t_ref[...],
                preferred_element_type=jnp.float32) + vecs_ref[0:1, :]

    # BatchNorm1d (training mode), centered/two-pass variance (PyTorch-style,
    # no E[h^2]-mean^2 cancellation). Reductions hit the XLU slot -> cheap.
    mean = jnp.sum(h, axis=0, keepdims=True) * inv_b
    c = h - mean
    var = jnp.sum(c * c, axis=0, keepdims=True) * inv_b
    scale = vecs_ref[1:2, :] * lax.rsqrt(var + EPS)          # gamma / sqrt(var+eps)
    hb = jnp.maximum(c * scale + vecs_ref[2:3, :], 0.0)      # BN + ReLU (f32)

    out = jnp.dot(hb.astype(jnp.bfloat16), w1t_ref[...],
                  preferred_element_type=jnp.float32)
    o_ref[...] = (out + b1_ref[...]).astype(o_ref.dtype)


# -----------------------------------------------------------------------------
# Kernel 2: batch-tiled two-pass BatchNorm path (large B).
# grid = (2, num_batch_tiles); axis 0 = pass, axis 1 = batch tile.
#   pass 0: linear0 + accumulate per-column sum / sumsq into VMEM scratch
#   pass 1: recompute linear0, normalize (batch stats) + ReLU + linear1, write.
# -----------------------------------------------------------------------------
def mlp_tiled_kernel(x_ref, w0t_ref, vecs_ref, b1_ref, w1t_ref, o_ref,
                     sum_ref, sumsq_ref, *, inv_b):
    p = pl.program_id(0)
    t = pl.program_id(1)

    h = jnp.dot(x_ref[...].astype(jnp.bfloat16), w0t_ref[...],
                preferred_element_type=jnp.float32) + vecs_ref[0:1, :]

    @pl.when((p == 0) & (t == 0))
    def _init():
        sum_ref[...] = jnp.zeros_like(sum_ref)
        sumsq_ref[...] = jnp.zeros_like(sumsq_ref)

    @pl.when(p == 0)
    def _accumulate():
        sum_ref[...] += jnp.sum(h, axis=0, keepdims=True)
        # TODO(synk): fuse this reduce so the (tile_b, h_p) h*h temp is not
        # materialized; it counts against the VMEM budget on v7x (64 MiB).
        sumsq_ref[...] += jnp.sum(h * h, axis=0, keepdims=True)

    @pl.when(p == 1)
    def _finalize():
        mean = sum_ref[...] * inv_b
        var = jnp.maximum(sumsq_ref[...] * inv_b - mean * mean, 0.0)
        scale = vecs_ref[1:2, :] * lax.rsqrt(var + EPS)
        shift = vecs_ref[2:3, :] - mean * scale
        hb = jnp.maximum(h * scale + shift, 0.0)
        out = jnp.dot(hb.astype(jnp.bfloat16), w1t_ref[...],
                      preferred_element_type=jnp.float32)
        o_ref[...] = (out + b1_ref[...]).astype(o_ref.dtype)


# -----------------------------------------------------------------------------
# Wrapper-side one-time weight preparation (cache the result; NOT per call).
# -----------------------------------------------------------------------------
def prepare_params(w0, b0, gamma, beta, w1, b1, feature_align=128):
    """Layout prep: pre-transpose weights, pad only the hidden (lane) dim, cast
    matmul operands to bf16, pack [b0, gamma, beta] into one (3, h_p) array.

    feature_align: use 256 on v6e/v7x when hidden >= 128 (256x256 MXU);
    128 is right for v5e and for small hidden.
    """
    hidden, in_dim = w0.shape
    out_w = w1.shape[0]
    h_p = _round_up(hidden, feature_align)

    w0t = jnp.zeros((in_dim, h_p), jnp.bfloat16).at[:, :hidden].set(
        w0.T.astype(jnp.bfloat16))
    w1t = jnp.zeros((h_p, out_w), jnp.bfloat16).at[:hidden, :].set(
        w1.T.astype(jnp.bfloat16))
    vecs = jnp.zeros((3, h_p), jnp.float32)
    vecs = vecs.at[0, :hidden].set(b0)
    vecs = vecs.at[1, :hidden].set(gamma)
    vecs = vecs.at[2, :hidden].set(beta)
    b1r = b1.reshape(1, out_w).astype(jnp.float32)
    return w0t, vecs, b1r, w1t


def mlp_forward(x, prepared_params, *, tile_b=256, out_dtype=jnp.float32):
    """MLP forward (n_linear=2): linear0 -> BatchNorm1d -> ReLU -> linear1.

    x: (B, in_dim) f32. prepared_params: cached output of prepare_params().
    tile_b: batch tile for the tiled path; 256 fills the MXU M axis on all
            generations while keeping per-tile VMEM far below v7x's 64 MiB.
    out_dtype: pass jnp.bfloat16 to halve output HBM traffic if downstream allows.

    NOTE: at B=8 the matmuls fill only 8 MXU rows -- batching more rows (e.g.
    several predictor evaluations) per call is the main throughput lever; rows
    cannot simply be zero-padded because BatchNorm stats span the real batch.
    """
    w0t, vecs, b1r, w1t = prepared_params
    B, in_dim = x.shape
    h_p = w0t.shape[1]
    out_w = w1t.shape[1]
    inv_b = 1.0 / B
    out_shape = jax.ShapeDtypeStruct((B, out_w), out_dtype)

    if B <= tile_b or B % tile_b != 0:
        # Small (or non-divisible) batch: one fused block, everything in VMEM.
        # TODO(synk): masked ragged-batch tiles so huge non-divisible B doesn't
        # fall back to a single block.
        vmem = pl.BlockSpec(memory_space=pltpu.MemorySpace.VMEM)
        return pl.pallas_call(
            functools.partial(mlp_small_kernel, inv_b=inv_b),
            out_shape=out_shape,
            in_specs=[vmem] * 5,
            out_specs=vmem,
            compiler_params=pltpu.CompilerParams(vmem_limit_bytes=VMEM_LIMIT),
        )(x, w0t, vecs, b1r, w1t)

    # Batch-tiled two-pass BatchNorm path. Weight/bias BlockSpecs are constant
    # in the grid index -> DMA'd once, resident in VMEM (1x weight traffic).
    # x is streamed twice (linear0 recomputed in pass 1 instead of spilling h).
    # Output index_map is (p * t): during pass 0 the block index never changes,
    # so no garbage block is ever written back -- each output block is written
    # to HBM exactly once, with pass-1 data.
    nt = B // tile_b
    grid_spec = pltpu.PrefetchScalarGridSpec(
        num_scalar_prefetch=0,
        grid=(2, nt),
        in_specs=[
            pl.BlockSpec((tile_b, in_dim), lambda p, t: (t, 0)),
            pl.BlockSpec((in_dim, h_p), lambda p, t: (0, 0)),
            pl.BlockSpec((3, h_p), lambda p, t: (0, 0)),
            pl.BlockSpec((1, out_w), lambda p, t: (0, 0)),
            pl.BlockSpec((h_p, out_w), lambda p, t: (0, 0)),
        ],
        out_specs=pl.BlockSpec((tile_b, out_w), lambda p, t: (p * t, 0)),
        scratch_shapes=[pltpu.VMEM((1, h_p), jnp.float32),   # sum
                        pltpu.VMEM((1, h_p), jnp.float32)],  # sumsq
    )
    # TODO(synk): on v7x, making the batch axis "parallel" (2 TensorCores)
    # requires a cross-core reduction of the BN statistics; until then both
    # grid axes stay "arbitrary".
    return pl.pallas_call(
        functools.partial(mlp_tiled_kernel, inv_b=inv_b),
        out_shape=out_shape,
        grid_spec=grid_spec,
        compiler_params=pltpu.CompilerParams(
            dimension_semantics=("arbitrary", "arbitrary"),
            vmem_limit_bytes=VMEM_LIMIT),
    )(x, w0t, vecs, b1r, w1t)


# -----------------------------------------------------------------------------
# Parameter init + references
# -----------------------------------------------------------------------------
def init_params(key, input_dim, hidden_dim):
    """Deterministic parameter init mimicking nn.Linear / nn.BatchNorm1d."""
    k0, k1, k2, k3 = jax.random.split(key, 4)
    lim0 = 1.0 / float(jnp.sqrt(input_dim))
    lim1 = 1.0 / float(jnp.sqrt(hidden_dim))
    w0 = jax.random.uniform(k0, (hidden_dim, input_dim), jnp.float32, -lim0, lim0)
    b0 = jax.random.uniform(k1, (hidden_dim,), jnp.float32, -lim0, lim0)
    w1 = jax.random.uniform(k2, (hidden_dim, hidden_dim), jnp.float32, -lim1, lim1)
    b1 = jax.random.uniform(k3, (hidden_dim,), jnp.float32, -lim1, lim1)
    gamma = jnp.ones((hidden_dim,), jnp.float32)
    beta = jnp.zeros((hidden_dim,), jnp.float32)
    return w0, b0, gamma, beta, w1, b1


def mlp_reference_f32(x, w0, b0, gamma, beta, w1, b1):
    """Exact f32 PyTorch-semantics reference (training-mode BatchNorm1d)."""
    h = x @ w0.T + b0
    mean = jnp.mean(h, axis=0, keepdims=True)
    var = jnp.mean((h - mean) ** 2, axis=0, keepdims=True)
    h = (h - mean) * lax.rsqrt(var + EPS) * gamma + beta
    h = jnp.maximum(h, 0.0)
    return h @ w1.T + b1


def mlp_reference_bf16(x, w0, b0, gamma, beta, w1, b1):
    """Reference matching the kernel's numerics (bf16 MXU inputs, f32 accumulate)."""
    h = jnp.dot(x.astype(jnp.bfloat16), w0.T.astype(jnp.bfloat16),
                preferred_element_type=jnp.float32) + b0
    mean = jnp.mean(h, axis=0, keepdims=True)
    var = jnp.mean((h - mean) ** 2, axis=0, keepdims=True)
    h = jnp.maximum((h - mean) * (gamma * lax.rsqrt(var + EPS)) + beta, 0.0)
    return jnp.dot(h.astype(jnp.bfloat16), w1.T.astype(jnp.bfloat16),
                   preferred_element_type=jnp.float32) + b1


if __name__ == "__main__":
    # ---- shipped (small) shapes from the predictor ---------------------------
    B, INPUT_DIM, HIDDEN_DIM = 8, 16, 32

    key = jax.random.PRNGKey(0)
    kx, kp, kx2, kp2 = jax.random.split(key, 4)

    x = jax.random.normal(kx, (B, INPUT_DIM), jnp.float32)
    params = init_params(kp, INPUT_DIM, HIDDEN_DIM)
    prepared = prepare_params(*params)          # one-time; cached across calls

    out = jax.block_until_ready(mlp_forward(x, prepared))
    assert out.shape == (B, HIDDEN_DIM)

    ref_matched = mlp_reference_bf16(x, *params)
    assert jnp.allclose(out, ref_matched, atol=2e-3, rtol=2e-3), \
        "small-batch path: mismatch vs bf16-matmul reference"

    ref_f32 = mlp_reference_f32(x, *params)
    assert jnp.allclose(out, ref_f32, atol=1e-1, rtol=1e-1), \
        "small-batch path: mismatch vs f32 PyTorch-semantics reference"

    # ---- exercise the batch-tiled two-pass BatchNorm path --------------------
    B2, IN2, H2, TILE = 256, 24, 96, 128        # h_p = 128, grid = (2, 2)
    x2 = jax.random.normal(kx2, (B2, IN2), jnp.float32)
    params2 = init_params(kp2, IN2, H2)
    prepared2 = prepare_params(*params2)

    out2 = jax.block_until_ready(mlp_forward(x2, prepared2, tile_b=TILE))
    assert out2.shape == (B2, H2)
    ref2 = mlp_reference_bf16(x2, *params2)
    assert jnp.allclose(out2, ref2, atol=2e-3, rtol=2e-3), \
        "tiled path: mismatch vs bf16-matmul reference"

    print("KERNEL_OK")
</pallas_src>

<mosaic_0001>
module attributes {stable_mosaic.version = 11 : i64} {
  func.func @mlp_small_kernel(%arg0: memref<8x16xf32, #tpu.memory_space<vmem>>, %arg1: memref<16x128xbf16, #tpu.memory_space<vmem>>, %arg2: memref<3x128xf32, #tpu.memory_space<vmem>>, %arg3: memref<1x32xf32, #tpu.memory_space<vmem>>, %arg4: memref<128x32xbf16, #tpu.memory_space<vmem>>, %arg5: memref<8x32xf32, #tpu.memory_space<vmem>>) attributes {dimension_semantics = [], scalar_prefetch = 0 : i64, scratch_operands = 0 : i64, tpu.core_type = #tpu.core_type<tc>} {
    %c0 = arith.constant 0 : index
    %c0_0 = arith.constant 0 : index
    %0 = vector.load %arg0[%c0, %c0_0] : memref<8x16xf32, #tpu.memory_space<vmem>>, vector<8x16xf32>
    %1 = arith.truncf %0 : vector<8x16xf32> to vector<8x16xbf16>
    %c0_1 = arith.constant 0 : index
    %c0_2 = arith.constant 0 : index
    %2 = vector.load %arg1[%c0_1, %c0_2] : memref<16x128xbf16, #tpu.memory_space<vmem>>, vector<16x128xbf16>
    %cst = arith.constant dense<0.000000e+00> : vector<8x128xf32>
    %3 = tpu.matmul %1, %2, %cst {dimension_numbers = #tpu.dot_dimension_numbers<[1], [0], [0], [1], [0, 0, 1, 1], [], []>} : vector<8x16xbf16>, vector<16x128xbf16>, vector<8x128xf32> -> vector<8x128xf32>
    %c0_3 = arith.constant 0 : index
    %c0_4 = arith.constant 0 : index
    %4 = vector.load %arg2[%c0_3, %c0_4] : memref<3x128xf32, #tpu.memory_space<vmem>>, vector<1x128xf32>
    %5 = vector.broadcast %4 : vector<1x128xf32> to vector<8x128xf32>
    %6 = arith.addf %3, %5 : vector<8x128xf32>
    %cst_5 = arith.constant dense<0.000000e+00> : vector<128xf32>
    %7 = vector.multi_reduction <add>, %6, %cst_5 [0] : vector<8x128xf32> to vector<128xf32>
    %8 = vector.shape_cast %7 : vector<128xf32> to vector<1x128xf32>
    %cst_6 = arith.constant 1.250000e-01 : f32
    %9 = vector.broadcast %cst_6 : f32 to vector<1x128xf32>
    %10 = arith.mulf %8, %9 : vector<1x128xf32>
    %11 = vector.broadcast %10 : vector<1x128xf32> to vector<8x128xf32>
    %12 = arith.subf %6, %11 : vector<8x128xf32>
    %13 = arith.mulf %12, %12 : vector<8x128xf32>
    %cst_7 = arith.constant dense<0.000000e+00> : vector<128xf32>
    %14 = vector.multi_reduction <add>, %13, %cst_7 [0] : vector<8x128xf32> to vector<128xf32>
    %15 = vector.shape_cast %14 : vector<128xf32> to vector<1x128xf32>
    %cst_8 = arith.constant 1.250000e-01 : f32
    %16 = vector.broadcast %cst_8 : f32 to vector<1x128xf32>
    %17 = arith.mulf %15, %16 : vector<1x128xf32>
    %c1 = arith.constant 1 : index
    %c0_9 = arith.constant 0 : index
    %18 = vector.load %arg2[%c1, %c0_9] : memref<3x128xf32, #tpu.memory_space<vmem>>, vector<1x128xf32>
    %cst_10 = arith.constant 9.99999974E-6 : f32
    %19 = vector.broadcast %cst_10 : f32 to vector<1x128xf32>
    %20 = arith.addf %17, %19 : vector<1x128xf32>
    %21 = math.rsqrt %20 : vector<1x128xf32>
    %22 = arith.mulf %18, %21 : vector<1x128xf32>
    %23 = vector.broadcast %22 : vector<1x128xf32> to vector<8x128xf32>
    %24 = arith.mulf %12, %23 : vector<8x128xf32>
    %c2 = arith.constant 2 : index
    %c0_11 = arith.constant 0 : index
    %25 = vector.load %arg2[%c2, %c0_11] : memref<3x128xf32, #tpu.memory_space<vmem>>, vector<1x128xf32>
    %26 = vector.broadcast %25 : vector<1x128xf32> to vector<8x128xf32>
    %27 = arith.addf %24, %26 : vector<8x128xf32>
    %cst_12 = arith.constant 0.000000e+00 : f32
    %28 = vector.broadcast %cst_12 : f32 to vector<8x128xf32>
    %29 = arith.maximumf %27, %28 : vector<8x128xf32>
    %30 = arith.truncf %29 : vector<8x128xf32> to vector<8x128xbf16>
    %c0_13 = arith.constant 0 : index
    %c0_14 = arith.constant 0 : index
    %31 = vector.load %arg4[%c0_13, %c0_14] : memref<128x32xbf16, #tpu.memory_space<vmem>>, vector<128x32xbf16>
    %cst_15 = arith.constant dense<0.000000e+00> : vector<8x32xf32>
    %32 = tpu.matmul %30, %31, %cst_15 {dimension_numbers = #tpu.dot_dimension_numbers<[1], [0], [0], [1], [0, 0, 1, 1], [], []>} : vector<8x128xbf16>, vector<128x32xbf16>, vector<8x32xf32> -> vector<8x32xf32>
    %c0_16 = arith.constant 0 : index
    %c0_17 = arith.constant 0 : index
    %33 = vector.load %arg3[%c0_16, %c0_17] : memref<1x32xf32, #tpu.memory_space<vmem>>, vector<1x32xf32>
    %34 = vector.broadcast %33 : vector<1x32xf32> to vector<8x32xf32>
    %35 = arith.addf %32, %34 : vector<8x32xf32>
    %c0_18 = arith.constant 0 : index
    %c0_19 = arith.constant 0 : index
    %36 = vector.load %arg5[%c0_18, %c0_19] : memref<8x32xf32, #tpu.memory_space<vmem>>, vector<8x32xf32>
    tpu.vector_store %arg5[%c0_18, %c0_19], %35 {strides = array<i32>} : memref<8x32xf32, #tpu.memory_space<vmem>>, vector<8x32xf32>,
    return
  }
}

</mosaic_0001>

<llo_original>
// kernel: tpu_custom_call.1
$region0: #{tpu_custom_call.1}
  #allocation0 [shape = 'u32[]', space=smem, size = 0x4, offset = 0x4, fixed_abs, tag = 'smem constant byte address 0x4 - core index']
  #allocation1 [shape = 'u32[144,128]{1,0:T(1,128)}', space=vmem, size = 0x12000, scoped, tag = 'internal scratch']
  %s0 = inlined_call_operand.vmem [shape: f32[8,16], index: 0, kind: input, shape index: {}]
  %s1 = inlined_call_operand.vmem [shape: bf16[16,128], index: 1, kind: input, shape index: {}]
  %s2 = inlined_call_operand.vmem [shape: f32[3,128], index: 2, kind: input, shape index: {}]
  %s3 = inlined_call_operand.vmem [shape: f32[1,32], index: 3, kind: input, shape index: {}]
  %s4 = inlined_call_operand.vmem [shape: bf16[128,32], index: 4, kind: input, shape index: {}]
  %s5 = inlined_call_operand.hbm [shape: f32[8,32], index: 5, kind: output, shape index: {}]
  %s6 = sld [smem:[#allocation0]]
  $region30: #{tpu_custom_call.1} parent=0
    _
  %s8 = ssub.s32 1, %s6
  %s9 = scalar_select 0, %s8, %s6
  $region1: #{tpu_custom_call.1} parent=0
    #allocation2 [shape = 'u8[4096]{0}', space=vmem, size = 0x1000, scoped, tag = 'output window, operand 0, single buffered']
    #allocation3 [shape = 's32[1]{0}', space=sflag, size = 0x4, scoped, tag = 'scoped memory for tpu_custom_call.1']
    %10 = vsyncpa [#allocation3], 0
    // Predicated region
    $region2: #{tpu_custom_call.1} parent=1 // pred_check
      _
    $region3: #{tpu_custom_call.1} parent=1 // pred_check_branch
      %12 = sbr.rel (0) target = $region5
    $region4: #{tpu_custom_call.1} parent=1 // pred_region
      _
    $region5: #{tpu_custom_call.1} parent=1 // pred_fallthru
      _
    // Predicated region
    $region6: #{tpu_custom_call.1} parent=1 // pred_check
      _
    $region7: #{tpu_custom_call.1} parent=1 // pred_check_branch
      %14 = sbr.rel (0) target = $region9
    $region8: #{tpu_custom_call.1} parent=1 // pred_region
      _
    $region9: #{tpu_custom_call.1} parent=1 // pred_fallthru
      _
    // Predicated region
    $region10: #{tpu_custom_call.1} parent=1 // pred_check
      _
    $region11: #{tpu_custom_call.1} parent=1 // pred_check_branch
      %16 = sbr.rel (0) target = $region13
    $region12: #{tpu_custom_call.1} parent=1 // pred_region
      _
    $region13: #{tpu_custom_call.1} parent=1 // pred_fallthru
      _
    // Predicated region
    $region14: #{tpu_custom_call.1} parent=1 // pred_check
      _
    $region15: #{tpu_custom_call.1} parent=1 // pred_check_branch
      %18 = sbr.rel (0) target = $region17
    $region16: #{tpu_custom_call.1} parent=1 // pred_region
      _
    $region17: #{tpu_custom_call.1} parent=1 // pred_fallthru
      _
    // Predicated region
    $region18: #{tpu_custom_call.1} parent=1 // pred_check
      _
    $region19: #{tpu_custom_call.1} parent=1 // pred_check_branch
      %20 = sbr.rel (0) target = $region21
    $region20: #{tpu_custom_call.1} parent=1 // pred_region
      _
    $region21: #{tpu_custom_call.1} parent=1 // pred_fallthru
      _
    %v22 = vld [vmem:[%s0] sm:$0xff]
    %v23 = vpack.c.bf16 %v22, %v22
    %v24 = vld [vmem:[%s1] sm:$0xf]
    %v25 = vld [vmem:[%s1 + $0x4] sm:$0xf]
    %v26 = vld [vmem:[%s2] sm:$0x1]
    %v27 = vlaneseq
    %v28 = vshrl.u32 %v27, 7
    %v29 = vsub.s32 0, %v28
    %v30 = vrot.slane %v26, %v29
    %v33 = vunpack.c.l.b16 %v24
    %v34 = vunpack.c.l.b16 %v25
    %v35 = vpack.c.b16 %v34, %v33
    %vm37 = vcmask 130048
    %v39 = vsel %vm37, %v23, 0
    %41 = vmatprep.subr.bf16.mxu0 0
    %42 = vmatpush1.bf16.msra.mxu0 %v35
    %43 = vmatprep.subr.bf16.mxu0 0
    %44 = vmatpush1.bf16.msra.mxu0 0
    %45 = vmatprep.subr.bf16.mxu0 0
    %46 = vmatpush1.bf16.msra.mxu0 0
    %47 = vmatprep.subr.bf16.mxu0 0
    %48 = vmatpush1.bf16.msra.mxu0 0
    %49 = vmatprep.subr.bf16.mxu0 0
    %50 = vmatpush1.bf16.msra.mxu0 0
    %51 = vmatprep.subr.bf16.mxu0 0
    %52 = vmatpush1.bf16.msra.mxu0 0
    %53 = vmatprep.subr.bf16.mxu0 0
    %54 = vmatpush1.bf16.msra.mxu0 0
    %55 = vmatprep.subr.bf16.mxu0 0
    %56 = vmatpush1.bf16.msra.mxu0 0
    %57 = vmatprep.subr.bf16.mxu0 0
    %58 = vmatpush1.bf16.msra.mxu0 0
    %59 = vmatprep.subr.bf16.mxu0 0
    %60 = vmatpush1.bf16.msra.mxu0 0
    %61 = vmatprep.subr.bf16.mxu0 0
    %62 = vmatpush1.bf16.msra.mxu0 0
    %63 = vmatprep.subr.bf16.mxu0 0
    %64 = vmatpush1.bf16.msra.mxu0 0
    %65 = vmatprep.subr.bf16.mxu0 0
    %66 = vmatpush1.bf16.msra.mxu0 0
    %67 = vmatprep.subr.bf16.mxu0 0
    %68 = vmatpush1.bf16.msra.mxu0 0
    %69 = vmatprep.subr.bf16.mxu0 0
    %70 = vmatpush1.bf16.msra.mxu0 0
    %71 = vmatprep.subr.bf16.mxu0 0
    %72 = vmatpush1.bf16.msra.mxu0 0
    %73 = vmatprep.mubr.bf16.mxu0 0
    %74 = vmatmul.mubr.bf16.gmra.mrb[0].mxu0 %v39
    %v75 = vpop.f32.mrb[0].mxu0
    %v76 = vadd.f32 %v30, %v75
    %v77 = vpop.f32.mrb[0].mxu0
    %v78 = vpop.f32.mrb[0].mxu0
    %v79 = vpop.f32.mrb[0].mxu0
    %80 = vdwg.mxu0
    %v81 = vrot.slane %v76, 4
    %v82 = vadd.f32 %v76, %v81
    %v83 = vrot.slane %v82, 2
    %v84 = vadd.f32 %v82, %v83
    %v85 = vrot.slane %v84, 1
    %v86 = vadd.f32 %v84, %v85
    %v87 = vmul.f32 %v86, 0.125
    %v88 = vsub.f32 %v76, %v87
    %v89 = vmul.f32 %v88, %v88
    %v90 = vrot.slane %v89, 4
    %v91 = vadd.f32 %v89, %v90
    %v92 = vrot.slane %v91, 2
    %v93 = vadd.f32 %v91, %v92
    %v94 = vrot.slane %v93, 1
    %v95 = vadd.f32 %v93, %v94
    %v96 = vmul.f32 %v95, 0.125
    %v97 = vld [vmem:[%s2 + $0x1] sm:$0x1]
    %v98 = vadd.f32 %v96, 1e-05
    %v99 = vrsqrt.pop %v98
    %v100 = vmul.f32 %v97, %v99
    %v101 = vlaneseq
    %v102 = vshrl.u32 %v101, 7
    %v103 = vsub.s32 0, %v102
    %v104 = vrot.slane %v100, %v103
    %v105 = vmul.f32 %v88, %v104
    %v106 = vld [vmem:[%s2 + $0x2] sm:$0x1]
    %v107 = vlaneseq
    %v108 = vshrl.u32 %v107, 7
    %v109 = vsub.s32 0, %v108
    %v110 = vrot.slane %v106, %v109
    %v111 = vadd.f32 %v105, %v110
    %v112 = vmax.f32 %v111, 0.0
    %v113 = vpack.c.bf16 %v112, %v112
    %v114 = vld [vmem:[%s4] sm:$0xf]
    %v115 = vld [vmem:[%s4 + $0x4] sm:$0xf]
    %v116 = vld [vmem:[%s4 + $0x8] sm:$0xf]
    %v117 = vld [vmem:[%s4 + $0xc] sm:$0xf]
    %v118 = vld [vmem:[%s4 + $0x10] sm:$0xf]
    %v119 = vld [vmem:[%s4 + $0x14] sm:$0xf]
    %v120 = vld [vmem:[%s4 + $0x18] sm:$0xf]
    %v121 = vld [vmem:[%s4 + $0x1c] sm:$0xf]
    %v122 = vld [vmem:[%s4 + $0x20] sm:$0xf]
    %v123 = vld [vmem:[%s4 + $0x24] sm:$0xf]
    %v124 = vld [vmem:[%s4 + $0x28] sm:$0xf]
    %v125 = vld [vmem:[%s4 + $0x2c] sm:$0xf]
    %v126 = vld [vmem:[%s4 + $0x30] sm:$0xf]
    %v127 = vld [vmem:[%s4 + $0x34] sm:$0xf]
    %v128 = vld [vmem:[%s4 + $0x38] sm:$0xf]
    %v129 = vld [vmem:[%s4 + $0x3c] sm:$0xf]
    %v130 = vld [vmem:[%s3] sm:$0x1]
    %v132 = vlaneseq
    %v133 = vshrl.u32 %v132, 7
    %v134 = vsub.s32 0, %v133
    %v135 = vrot.slane %v130, %v134
    %v153 = vunpack.c.l.b16 %v114
    %v154 = vunpack.c.l.b16 %v115
    %v155 = vunpack.c.l.b16 %v116
    %v156 = vunpack.c.l.b16 %v117
    %v157 = vunpack.c.l.b16 %v118
    %v158 = vunpack.c.l.b16 %v119
    %v159 = vunpack.c.l.b16 %v120
    %v160 = vunpack.c.l.b16 %v121
    %v161 = vunpack.c.l.b16 %v122
    %v162 = vunpack.c.l.b16 %v123
    %v163 = vunpack.c.l.b16 %v124
    %v164 = vunpack.c.l.b16 %v125
    %v165 = vunpack.c.l.b16 %v126
    %v166 = vunpack.c.l.b16 %v127
    %v167 = vunpack.c.l.b16 %v128
    %v168 = vunpack.c.l.b16 %v129
    %v169 = vpack.c.b16 %v154, %v153
    %v170 = vpack.c.b16 %v156, %v155
    %v171 = vpack.c.b16 %v158, %v157
    %v172 = vpack.c.b16 %v160, %v159
    %v173 = vpack.c.b16 %v162, %v161
    %v174 = vpack.c.b16 %v164, %v163
    %v175 = vpack.c.b16 %v166, %v165
    %v176 = vpack.c.b16 %v168, %v167
    %185 = vmatprep.subr.bf16.mxu0 0
    %186 = vmatpush1.bf16.msra.mxu0 %v169
    %187 = vmatprep.subr.bf16.mxu0 0
    %188 = vmatpush1.bf16.msra.mxu0 %v170
    %189 = vmatprep.subr.bf16.mxu0 0
    %190 = vmatpush1.bf16.msra.mxu0 %v171
    %191 = vmatprep.subr.bf16.mxu0 0
    %192 = vmatpush1.bf16.msra.mxu0 %v172
    %193 = vmatprep.subr.bf16.mxu0 0
    %194 = vmatpush1.bf16.msra.mxu0 %v173
    %195 = vmatprep.subr.bf16.mxu0 0
    %196 = vmatpush1.bf16.msra.mxu0 %v174
    %197 = vmatprep.subr.bf16.mxu0 0
    %198 = vmatpush1.bf16.msra.mxu0 %v175
    %199 = vmatprep.subr.bf16.mxu0 0
    %200 = vmatpush1.bf16.msra.mxu0 %v176
    %201 = vmatprep.subr.bf16.mxu0 0
    %202 = vmatpush1.bf16.msra.mxu0 0
    %203 = vmatprep.subr.bf16.mxu0 0
    %204 = vmatpush1.bf16.msra.mxu0 0
    %205 = vmatprep.subr.bf16.mxu0 0
    %206 = vmatpush1.bf16.msra.mxu0 0
    %207 = vmatprep.subr.bf16.mxu0 0
    %208 = vmatpush1.bf16.msra.mxu0 0
    %209 = vmatprep.subr.bf16.mxu0 0
    %210 = vmatpush1.bf16.msra.mxu0 0
    %211 = vmatprep.subr.bf16.mxu0 0
    %212 = vmatpush1.bf16.msra.mxu0 0
    %213 = vmatprep.subr.bf16.mxu0 0
    %214 = vmatpush1.bf16.msra.mxu0 0
    %215 = vmatprep.subr.bf16.mxu0 0
    %216 = vmatpush1.bf16.msra.mxu0 0
    %217 = vmatprep.mubr.bf16.mxu0 0
    %218 = vmatmul.mubr.bf16.gmra.mrb[0].mxu0 %v113
    %v219 = vpop.f32.mrb[0].mxu0
    %v220 = vadd.f32 %v135, %v219
    %v221 = vpop.f32.mrb[0].mxu0
    %v222 = vpop.f32.mrb[0].mxu0
    %v223 = vpop.f32.mrb[0].mxu0
    %224 = vdwg.mxu0
    %vm225 = vcmask 261120
    %226 = vst.msk [vmem:[#allocation2] sm:$0xff] %vm225, %v220
    // Predicated region
    $region22: #{tpu_custom_call.1} parent=1 // pred_check
      _
    $region23: #{tpu_custom_call.1} parent=1 // pred_check_branch
      %228 = sbr.rel (0) target = $region25
    $region24: #{tpu_custom_call.1} parent=1 // pred_region
      %s230 = ssub.s32 128, 128
      %231 = vsyncadd [#allocation3], %s230
      %s233 = sshll.u32 [#allocation2], 4
      %s234 = int_to_ptr.vmem [resolvable:$true] %s233
      %236 = dma.vmem_to_hbm [thread:$0]  %s234, 128, %s5, [#allocation3]
    $region25: #{tpu_custom_call.1} parent=1 // pred_fallthru
      _
    // Predicated region
    $region26: #{tpu_custom_call.1} parent=1 // pred_check
      _
    $region27: #{tpu_custom_call.1} parent=1 // pred_check_branch
      %238 = sbr.rel (0) target = $region29
    $region28: #{tpu_custom_call.1} parent=1 // pred_region
      %239 = dma.done [#allocation3], 128
    $region29: #{tpu_custom_call.1} parent=1 // pred_fallthru
      _
    %240 = vsyncpa [#allocation3], 1

</llo_original>
